<compile_context>
chip_gen: v7x
topology: tpu7x:2x2x1
jax: 0.10.0
libtpu: 0.0.40
codegen_flags: <defaults>
</compile_context>

<pallas_src>
import jax
import jax.numpy as jnp
from jax.experimental import pallas as pl
from jax.experimental.pallas import tpu as pltpu


def _channel_se_kernel(x_ref, w1t_ref, b1_ref, w2_ref, b2_ref, out_ref):
    """One (TB, C, HWp) batch-block per grid step.

    x_ref:   (TB, C, HWp)  input, channels on sublanes, flat spatial on lanes
    w1t_ref: (C, R)        fc1.weight.T pre-scaled by 1/HW (folds the mean)
    b1_ref:  (1, R)        fc1.bias
    w2_ref:  (C, R)        fc2.weight
    b2_ref:  (1, C)        fc2.bias
    out_ref: (TB, C, HWp)
    """
    x = x_ref[...]                                               # native dtype

    # Squeeze: spatial sum (lane reduction); 1/HW is folded into w1t, and the
    # zero-padded lanes contribute nothing, so this equals the true mean path.
    s = jnp.sum(x, axis=-1, keepdims=True, dtype=jnp.float32)    # (TB, C, 1)

    # fc1 + ReLU on VPU/XLU (K=C, N=R are degenerate MXU shapes; keep off MXU).
    w1t = w1t_ref[...].astype(jnp.float32)                       # (C, R)
    y1 = jnp.sum(w1t * s, axis=1) + b1_ref[...]                  # (TB, R)
    y1 = jnp.maximum(y1, 0.0)

    # fc2 + sigmoid.
    w2 = w2_ref[...].astype(jnp.float32)                         # (C, R)
    y2 = jnp.sum(w2 * y1[:, None, :], axis=-1) + b2_ref[...]     # (TB, C)
    scale = jax.nn.sigmoid(y2)[..., None]                        # (TB, C, 1)

    # Excite: per-channel rescale, broadcast over the lane-dense spatial dim.
    out_ref[...] = (x * scale.astype(x.dtype)).astype(out_ref.dtype)


def channel_se_layer(x_nchw, fc1_w, fc1_b, fc2_w, fc2_b,
                     *, vmem_tile_budget_bytes=24 << 20):
    """ChannelSELayer forward.

    x_nchw: (B, C, H, W)
    fc1_w:  (R, C)  fc1.weight (PyTorch layout: out_features x in_features)
    fc1_b:  (R,)
    fc2_w:  (C, R)  fc2.weight
    fc2_b:  (C,)
    Returns (B, C, H, W).
    """
    B, C, H, W = x_nchw.shape
    R = fc1_w.shape[0]
    HW = H * W

    # Lane-dense view of the input: minor dim H*W, channels on sublanes.
    # Zero-pad HW up to a multiple of 128 so output stores are unmasked vst.
    HWp = ((HW + 127) // 128) * 128
    x_flat = x_nchw.reshape(B, C, HW)
    if HWp != HW:
        x_flat = jnp.pad(x_flat, ((0, 0), (0, 0), (0, HWp - HW)))

    # Batch-block size TB: biggest tile that keeps double-buffered input +
    # output inside the VMEM budget, while keeping >= 2 grid steps when B >= 2
    # (lets the "parallel" axis shard across v7x's two TensorCores).
    bytes_per_batch_elem = C * HWp * x_flat.dtype.itemsize
    tb_cap = max(1, vmem_tile_budget_bytes // (4 * bytes_per_batch_elem))
    if B <= 1:
        tb = 1
    else:
        n_blocks = max(2, -(-B // tb_cap))
        tb = -(-B // n_blocks)
    grid_b = -(-B // tb)
    Bp = grid_b * tb
    if Bp != B:
        x_flat = jnp.pad(x_flat, ((0, Bp - B), (0, 0), (0, 0)))

    # FC parameters in f32; fold the 1/HW of the mean into fc1's weight.
    w1t = (fc1_w.T / HW).astype(jnp.float32)        # (C, R)
    b1 = fc1_b.reshape(1, R).astype(jnp.float32)
    w2 = fc2_w.astype(jnp.float32)                  # (C, R)
    b2 = fc2_b.reshape(1, C).astype(jnp.float32)

    out_flat = pl.pallas_call(
        _channel_se_kernel,
        out_shape=jax.ShapeDtypeStruct((Bp, C, HWp), x_nchw.dtype),
        grid_spec=pltpu.PrefetchScalarGridSpec(
            num_scalar_prefetch=0,
            grid=(grid_b,),
            in_specs=[
                pl.BlockSpec((tb, C, HWp), lambda b: (b, 0, 0)),
                pl.BlockSpec((C, R), lambda b: (0, 0)),
                pl.BlockSpec((1, R), lambda b: (0, 0)),
                pl.BlockSpec((C, R), lambda b: (0, 0)),
                pl.BlockSpec((1, C), lambda b: (0, 0)),
            ],
            out_specs=pl.BlockSpec((tb, C, HWp), lambda b: (b, 0, 0)),
        ),
        compiler_params=pltpu.CompilerParams(
            # Batch blocks are fully independent (no cross-step scratch).
            dimension_semantics=("parallel",),
            # Raise scoped VMEM above the 16/32 MiB defaults; 40 MiB is still
            # comfortably below v7x's 64 MiB physical VMEM.
            vmem_limit_bytes=40 << 20,
        ),
    )(x_flat, w1t, b1, w2, b2)

    return out_flat[:B, :, :HW].reshape(B, C, H, W)


def reference(x, fc1_w, fc1_b, fc2_w, fc2_b):
    """Pure-JAX NCHW reference mirroring PyTorch ChannelSELayer.forward."""
    B, C, H, W = x.shape
    s = x.reshape(B, C, -1).mean(axis=2)                     # (B, C)
    y1 = jnp.maximum(s @ fc1_w.T + fc1_b, 0.0)               # (B, R)
    y2 = jax.nn.sigmoid(y1 @ fc2_w.T + fc2_b)                # (B, C)
    return x * y2[:, :, None, None]


def _make_params(key, C, R):
    k1w, k1b, k2w, k2b = jax.random.split(key, 4)
    # nn.Linear weight layout: (out_features, in_features)
    fc1_w = jax.random.normal(k1w, (R, C), jnp.float32) * (C ** -0.5)
    fc1_b = jax.random.normal(k1b, (R,), jnp.float32) * 0.1
    fc2_w = jax.random.normal(k2w, (C, R), jnp.float32) * (R ** -0.5)
    fc2_b = jax.random.normal(k2b, (C,), jnp.float32) * 0.1
    return fc1_w, fc1_b, fc2_w, fc2_b


if __name__ == "__main__":
    key = jax.random.PRNGKey(0)
    kp, kx1, kx2 = jax.random.split(key, 3)

    # Case 1: lane-aligned spatial (H*W = 256), even batch.
    B, C, H, W = 2, 32, 16, 16
    R = C // 2
    fc1_w, fc1_b, fc2_w, fc2_b = _make_params(kp, C, R)
    x1 = jax.random.normal(kx1, (B, C, H, W), jnp.float32)
    out1 = jax.block_until_ready(channel_se_layer(x1, fc1_w, fc1_b, fc2_w, fc2_b))
    ref1 = jax.block_until_ready(reference(x1, fc1_w, fc1_b, fc2_w, fc2_b))
    err1 = float(jnp.max(jnp.abs(out1 - ref1)))
    if err1 > 1e-4:
        raise AssertionError(f"case1 mismatch, max abs err = {err1}")

    # Case 2: non-128-multiple spatial (14x14 = 196 -> padded to 256) and odd
    # batch (3 -> padded to 4) to exercise the padding paths.
    B2, H2, W2 = 3, 14, 14
    x2 = jax.random.normal(kx2, (B2, C, H2, W2), jnp.float32)
    out2 = jax.block_until_ready(channel_se_layer(x2, fc1_w, fc1_b, fc2_w, fc2_b))
    ref2 = jax.block_until_ready(reference(x2, fc1_w, fc1_b, fc2_w, fc2_b))
    err2 = float(jnp.max(jnp.abs(out2 - ref2)))
    if err2 > 1e-4:
        raise AssertionError(f"case2 mismatch, max abs err = {err2}")

    print("KERNEL_OK")
</pallas_src>

<mosaic_0001>
module attributes {stable_mosaic.version = 11 : i64} {
  func.func @_channel_se_kernel(%arg0: i32, %arg1: memref<1x32x256xf32, #tpu.memory_space<vmem>>, %arg2: memref<32x16xf32, #tpu.memory_space<vmem>>, %arg3: memref<1x16xf32, #tpu.memory_space<vmem>>, %arg4: memref<32x16xf32, #tpu.memory_space<vmem>>, %arg5: memref<1x32xf32, #tpu.memory_space<vmem>>, %arg6: memref<1x32x256xf32, #tpu.memory_space<vmem>>) attributes {dimension_semantics = [#tpu.dimension_semantics<parallel>], iteration_bounds = array<i64: 2>, scalar_prefetch = 0 : i64, scratch_operands = 0 : i64, tpu.core_type = #tpu.core_type<tc>, window_params = [{transform_indices = @transform_0, window_bounds = array<i64: 1, 32, 256>}, {pipeline_mode = #tpu.pipeline_mode<synchronous>, transform_indices = @transform_1, window_bounds = array<i64: 32, 16>}, {pipeline_mode = #tpu.pipeline_mode<synchronous>, transform_indices = @transform_2, window_bounds = array<i64: 1, 16>}, {pipeline_mode = #tpu.pipeline_mode<synchronous>, transform_indices = @transform_3, window_bounds = array<i64: 32, 16>}, {pipeline_mode = #tpu.pipeline_mode<synchronous>, transform_indices = @transform_4, window_bounds = array<i64: 1, 32>}, {transform_indices = @transform_5, window_bounds = array<i64: 1, 32, 256>}]} {
    %c0 = arith.constant 0 : index
    %c0_0 = arith.constant 0 : index
    %c0_1 = arith.constant 0 : index
    %0 = vector.load %arg1[%c0, %c0_0, %c0_1] : memref<1x32x256xf32, #tpu.memory_space<vmem>>, vector<1x32x256xf32>
    %cst = arith.constant dense<0.000000e+00> : vector<1x32xf32>
    %1 = vector.multi_reduction <add>, %0, %cst [2] : vector<1x32x256xf32> to vector<1x32xf32>
    %2 = vector.shape_cast %1 : vector<1x32xf32> to vector<1x32x1xf32>
    %c0_2 = arith.constant 0 : index
    %c0_3 = arith.constant 0 : index
    %3 = vector.load %arg2[%c0_2, %c0_3] : memref<32x16xf32, #tpu.memory_space<vmem>>, vector<32x16xf32>
    %4 = vector.shape_cast %3 : vector<32x16xf32> to vector<1x32x16xf32>
    %5 = vector.broadcast %2 : vector<1x32x1xf32> to vector<1x32x16xf32>
    %6 = arith.mulf %4, %5 : vector<1x32x16xf32>
    %cst_4 = arith.constant dense<0.000000e+00> : vector<1x16xf32>
    %7 = vector.multi_reduction <add>, %6, %cst_4 [1] : vector<1x32x16xf32> to vector<1x16xf32>
    %c0_5 = arith.constant 0 : index
    %c0_6 = arith.constant 0 : index
    %8 = vector.load %arg3[%c0_5, %c0_6] : memref<1x16xf32, #tpu.memory_space<vmem>>, vector<1x16xf32>
    %9 = arith.addf %7, %8 : vector<1x16xf32>
    %cst_7 = arith.constant 0.000000e+00 : f32
    %10 = vector.broadcast %cst_7 : f32 to vector<1x16xf32>
    %11 = arith.maximumf %9, %10 : vector<1x16xf32>
    %c0_8 = arith.constant 0 : index
    %c0_9 = arith.constant 0 : index
    %12 = vector.load %arg4[%c0_8, %c0_9] : memref<32x16xf32, #tpu.memory_space<vmem>>, vector<32x16xf32>
    %13 = vector.shape_cast %11 : vector<1x16xf32> to vector<1x1x16xf32>
    %14 = vector.shape_cast %12 : vector<32x16xf32> to vector<1x32x16xf32>
    %15 = vector.broadcast %13 : vector<1x1x16xf32> to vector<1x32x16xf32>
    %16 = arith.mulf %14, %15 : vector<1x32x16xf32>
    %cst_10 = arith.constant dense<0.000000e+00> : vector<1x32xf32>
    %17 = vector.multi_reduction <add>, %16, %cst_10 [2] : vector<1x32x16xf32> to vector<1x32xf32>
    %c0_11 = arith.constant 0 : index
    %c0_12 = arith.constant 0 : index
    %18 = vector.load %arg5[%c0_11, %c0_12] : memref<1x32xf32, #tpu.memory_space<vmem>>, vector<1x32xf32>
    %19 = arith.addf %17, %18 : vector<1x32xf32>
    %20 = arith.negf %19 : vector<1x32xf32>
    %21 = math.exp %20 : vector<1x32xf32>
    %cst_13 = arith.constant 1.000000e+00 : f32
    %22 = vector.broadcast %cst_13 : f32 to vector<1x32xf32>
    %23 = arith.addf %22, %21 : vector<1x32xf32>
    %24 = arith.divf %22, %23 : vector<1x32xf32>
    %25 = vector.shape_cast %24 : vector<1x32xf32> to vector<1x32x1xf32>
    %26 = vector.broadcast %25 : vector<1x32x1xf32> to vector<1x32x256xf32>
    %27 = arith.mulf %0, %26 : vector<1x32x256xf32>
    %c0_14 = arith.constant 0 : index
    %c0_15 = arith.constant 0 : index
    %c0_16 = arith.constant 0 : index
    %28 = vector.load %arg6[%c0_14, %c0_15, %c0_16] : memref<1x32x256xf32, #tpu.memory_space<vmem>>, vector<1x32x256xf32>
    tpu.vector_store %arg6[%c0_14, %c0_15, %c0_16], %27 {strides = array<i32>} : memref<1x32x256xf32, #tpu.memory_space<vmem>>, vector<1x32x256xf32>,
    return
  }
  func.func @transform_0(%arg0: i32) -> (i32, i32, i32) {
    %c0_i32 = arith.constant 0 : i32
    %c0_i32_0 = arith.constant 0 : i32
    %c0_i32_1 = arith.constant 0 : i32
    return %arg0, %c0_i32, %c0_i32_0 : i32, i32, i32
  }
  func.func @transform_1(%arg0: i32) -> (i32, i32) {
    %c0_i32 = arith.constant 0 : i32
    %c0_i32_0 = arith.constant 0 : i32
    %c0_i32_1 = arith.constant 0 : i32
    return %c0_i32, %c0_i32_0 : i32, i32
  }
  func.func @transform_2(%arg0: i32) -> (i32, i32) {
    %c0_i32 = arith.constant 0 : i32
    %c0_i32_0 = arith.constant 0 : i32
    %c0_i32_1 = arith.constant 0 : i32
    return %c0_i32, %c0_i32_0 : i32, i32
  }
  func.func @transform_3(%arg0: i32) -> (i32, i32) {
    %c0_i32 = arith.constant 0 : i32
    %c0_i32_0 = arith.constant 0 : i32
    %c0_i32_1 = arith.constant 0 : i32
    return %c0_i32, %c0_i32_0 : i32, i32
  }
  func.func @transform_4(%arg0: i32) -> (i32, i32) {
    %c0_i32 = arith.constant 0 : i32
    %c0_i32_0 = arith.constant 0 : i32
    %c0_i32_1 = arith.constant 0 : i32
    return %c0_i32, %c0_i32_0 : i32, i32
  }
  func.func @transform_5(%arg0: i32) -> (i32, i32, i32) {
    %c0_i32 = arith.constant 0 : i32
    %c0_i32_0 = arith.constant 0 : i32
    %c0_i32_1 = arith.constant 0 : i32
    return %arg0, %c0_i32, %c0_i32_0 : i32, i32, i32
  }
}

</mosaic_0001>

<llo_original>
// kernel: tpu_custom_call.1
$region0: #{tpu_custom_call.1}
  #allocation0 [shape = 'u32[]', space=smem, size = 0x4, offset = 0x4, fixed_abs, tag = 'smem constant byte address 0x4 - core index']
  #allocation1 [shape = 'u32[144,128]{1,0:T(1,128)}', space=vmem, size = 0x12000, scoped, tag = 'internal scratch']
  %s0 = inlined_call_operand.hbm [shape: f32[2,32,256], index: 0, kind: input, shape index: {}]
  %s1 = inlined_call_operand.vmem [shape: f32[32,16], index: 1, kind: input, shape index: {}]
  %s2 = inlined_call_operand.vmem [shape: f32[1,16], index: 2, kind: input, shape index: {}]
  %s3 = inlined_call_operand.vmem [shape: f32[32,16], index: 3, kind: input, shape index: {}]
  %s4 = inlined_call_operand.vmem [shape: f32[1,32], index: 4, kind: input, shape index: {}]
  %s5 = inlined_call_operand.hbm [shape: f32[2,32,256], index: 5, kind: output, shape index: {}]
  %s6 = sld [smem:[#allocation0]]
  $region57: #{tpu_custom_call.1} parent=0
    _
  %s8 = ssub.s32 1, %s6
  %s9 = scalar_select 0, %s8, %s6
  $region1: #{tpu_custom_call.1} parent=0
    #allocation2 [shape = 'u8[65536]{0}', space=vmem, size = 0x10000, scoped, tag = 'input window, operand 0']
    #allocation3 [shape = 's32[2]{0}', space=sflag, size = 0x8, scoped, tag = 'scoped memory for tpu_custom_call.1']
    #allocation4 [shape = 's32[2]{0}', space=sflag, size = 0x8, scoped, tag = 'scoped memory for tpu_custom_call.1']
    #allocation5 [shape = 'u8[65536]{0}', space=vmem, size = 0x10000, scoped, tag = 'output window, operand 0']
    %10 = vsyncpa [#allocation3], 0
    %s11 = scalar_lea.sflag [#allocation3], 1
    %12 = vsyncpa %s11, 0
    %13 = vsyncpa [#allocation4], 0
    %s14 = scalar_lea.sflag [#allocation4], 1
    %15 = vsyncpa %s14, 0
    loop: start=0, step=1, limit=4
    $region2: #{tpu_custom_call.1} parent=1 // loop_pre_header
      _
    $region3: #{tpu_custom_call.1} parent=1 // loop_header
      %s17 = sphi 0, %s21
      %p18 = scmp.ge.s32.totalorder %s17, 4
      %s27 = sphi 0, %s29
      %s30 = sphi 0, %s27
      %s31 = sphi 0, %s30
      %s47 = sphi 0, %s31
      %s51 = sphi 0, %s51
      %s53 = sphi 0, %s51
      %s54 = sphi 0, %s53
      %s68 = sphi 0, %s54
      %s72 = sphi 0, %s72
      %s74 = sphi 0, %s72
      %s75 = sphi 0, %s74
      %s89 = sphi 0, %s75
      %s93 = sphi 0, %s93
      %s95 = sphi 0, %s93
      %s96 = sphi 0, %s95
      %s110 = sphi 0, %s96
      %s114 = sphi 0, %s114
      %s116 = sphi 0, %s114
      %s117 = sphi 0, %s116
      %s131 = sphi 0, %s117
      %s137 = sphi 0, %s139
      %s140 = sphi 0, %s137
      %s141 = sphi 0, %s140
      %s157 = sphi 0, %s141
    $region4: #{tpu_custom_call.1} parent=1 // loop_header_branch
      %20 = sbr.rel (%p18) target = $region8
    $region5: #{tpu_custom_call.1} parent=1 // loop_body
      %s22 = ssub.s32 %s17, 1
      %s23 = ssub.s32 %s17, 2
      %s24 = sadd.s32 %s17, 1
      %s25 = ssub.s32 %s17, %s24
      %p26 = scmp.eq.s32.totalorder %s25, 0
      %s28 = sadd.s32 %s27, 1
      %s29 = scalar_select %p26, %s27, %s28
      %p32 = pneg %p26
      %p33 = scmp.eq.s32.totalorder %s17, 1
      %p34 = por %p32, %p33
      %p35 = scmp.ne.s32.totalorder %s27, %s30
      %p36 = scmp.eq.s32.totalorder %s17, 0
      %p37 = por %p35, %p36
      %p38 = scmp.ne.s32.totalorder %s27, %s30
      %p39 = scmp.eq.s32.totalorder %s22, 1
      %p40 = por %p38, %p39
      %p41 = scmp.ne.s32.totalorder %s30, %s31
      %p42 = scmp.eq.s32.totalorder %s22, 0
      %p43 = por %p41, %p42
      %p44 = scmp.ne.s32.totalorder %s30, %s31
      %p45 = scmp.eq.s32.totalorder %s23, 1
      %p46 = por %p44, %p45
      %p48 = scmp.ne.s32.totalorder %s31, %s47
      %p49 = scmp.eq.s32.totalorder %s23, 0
      %p50 = por %p48, %p49
      %s52 = sadd.s32 %s51, 1
      %p55 = scmp.eq.s32.totalorder %s17, 1
      %p56 = scmp.ne.s32.totalorder %s51, %s53
      %p57 = scmp.eq.s32.totalorder %s17, 0
      %p58 = por %p56, %p57
      %p59 = scmp.ne.s32.totalorder %s51, %s53
      %p60 = scmp.eq.s32.totalorder %s22, 1
      %p61 = por %p59, %p60
      %p62 = scmp.ne.s32.totalorder %s53, %s54
      %p63 = scmp.eq.s32.totalorder %s22, 0
      %p64 = por %p62, %p63
      %p65 = scmp.ne.s32.totalorder %s53, %s54
      %p66 = scmp.eq.s32.totalorder %s23, 1
      %p67 = por %p65, %p66
      %p69 = scmp.ne.s32.totalorder %s54, %s68
      %p70 = scmp.eq.s32.totalorder %s23, 0
      %p71 = por %p69, %p70
      %s73 = sadd.s32 %s72, 1
      %p76 = scmp.eq.s32.totalorder %s17, 1
      %p77 = scmp.ne.s32.totalorder %s72, %s74
      %p78 = scmp.eq.s32.totalorder %s17, 0
      %p79 = por %p77, %p78
      %p80 = scmp.ne.s32.totalorder %s72, %s74
      %p81 = scmp.eq.s32.totalorder %s22, 1
      %p82 = por %p80, %p81
      %p83 = scmp.ne.s32.totalorder %s74, %s75
      %p84 = scmp.eq.s32.totalorder %s22, 0
      %p85 = por %p83, %p84
      %p86 = scmp.ne.s32.totalorder %s74, %s75
      %p87 = scmp.eq.s32.totalorder %s23, 1
      %p88 = por %p86, %p87
      %p90 = scmp.ne.s32.totalorder %s75, %s89
      %p91 = scmp.eq.s32.totalorder %s23, 0
      %p92 = por %p90, %p91
      %s94 = sadd.s32 %s93, 1
      %p97 = scmp.eq.s32.totalorder %s17, 1
      %p98 = scmp.ne.s32.totalorder %s93, %s95
      %p99 = scmp.eq.s32.totalorder %s17, 0
      %p100 = por %p98, %p99
      %p101 = scmp.ne.s32.totalorder %s93, %s95
      %p102 = scmp.eq.s32.totalorder %s22, 1
      %p103 = por %p101, %p102
      %p104 = scmp.ne.s32.totalorder %s95, %s96
      %p105 = scmp.eq.s32.totalorder %s22, 0
      %p106 = por %p104, %p105
      %p107 = scmp.ne.s32.totalorder %s95, %s96
      %p108 = scmp.eq.s32.totalorder %s23, 1
      %p109 = por %p107, %p108
      %p111 = scmp.ne.s32.totalorder %s96, %s110
      %p112 = scmp.eq.s32.totalorder %s23, 0
      %p113 = por %p111, %p112
      %s115 = sadd.s32 %s114, 1
      %p118 = scmp.eq.s32.totalorder %s17, 1
      %p119 = scmp.ne.s32.totalorder %s114, %s116
      %p120 = scmp.eq.s32.totalorder %s17, 0
      %p121 = por %p119, %p120
      %p122 = scmp.ne.s32.totalorder %s114, %s116
      %p123 = scmp.eq.s32.totalorder %s22, 1
      %p124 = por %p122, %p123
      %p125 = scmp.ne.s32.totalorder %s116, %s117
      %p126 = scmp.eq.s32.totalorder %s22, 0
      %p127 = por %p125, %p126
      %p128 = scmp.ne.s32.totalorder %s116, %s117
      %p129 = scmp.eq.s32.totalorder %s23, 1
      %p130 = por %p128, %p129
      %p132 = scmp.ne.s32.totalorder %s117, %s131
      %p133 = scmp.eq.s32.totalorder %s23, 0
      %p134 = por %p132, %p133
      %s135 = ssub.s32 %s17, %s24
      %p136 = scmp.eq.s32.totalorder %s135, 0
      %s138 = sadd.s32 %s137, 1
      %s139 = scalar_select %p136, %s137, %s138
      %p142 = pneg %p136
      %p143 = scmp.eq.s32.totalorder %s17, 1
      %p144 = por %p142, %p143
      %p145 = scmp.ne.s32.totalorder %s137, %s140
      %p146 = scmp.eq.s32.totalorder %s17, 0
      %p147 = por %p145, %p146
      %p148 = scmp.ne.s32.totalorder %s137, %s140
      %p149 = scmp.eq.s32.totalorder %s22, 1
      %p150 = por %p148, %p149
      %p151 = scmp.ne.s32.totalorder %s140, %s141
      %p152 = scmp.eq.s32.totalorder %s22, 0
      %p153 = por %p151, %p152
      %p154 = scmp.ne.s32.totalorder %s140, %s141
      %p155 = scmp.eq.s32.totalorder %s23, 1
      %p156 = por %p154, %p155
      %p158 = scmp.ne.s32.totalorder %s141, %s157
      %p159 = scmp.eq.s32.totalorder %s23, 0
      %p160 = por %p158, %p159
      %p161 = scmp.le.s32.totalorder 1, %s17
      %p162 = scmp.lt.s32.totalorder %s17, 3
      %p163 = pnand %p161, %p162
      %p164 = pneg %p163
      // Predicated region
      $region9: #{tpu_custom_call.1} parent=5 // pred_check
        _
      $region10: #{tpu_custom_call.1} parent=5 // pred_check_branch
        %166 = sbr.rel (%p163) target = $region12
      $region11: #{tpu_custom_call.1} parent=5 // pred_region
        %s167 = ssub.s32 %s17, 1
        // Predicated region
        $region13: #{tpu_custom_call.1} parent=11 // pred_check
          %p168 = pneg %p64
        $region14: #{tpu_custom_call.1} parent=11 // pred_check_branch
          %170 = sbr.rel (%p168) target = $region16
        $region15: #{tpu_custom_call.1} parent=11 // pred_region
          _
        $region16: #{tpu_custom_call.1} parent=11 // pred_fallthru
          _
        // Predicated region
        $region17: #{tpu_custom_call.1} parent=11 // pred_check
          %p171 = pneg %p85
        $region18: #{tpu_custom_call.1} parent=11 // pred_check_branch
          %173 = sbr.rel (%p171) target = $region20
        $region19: #{tpu_custom_call.1} parent=11 // pred_region
          _
        $region20: #{tpu_custom_call.1} parent=11 // pred_fallthru
          _
        // Predicated region
        $region21: #{tpu_custom_call.1} parent=11 // pred_check
          %p174 = pneg %p106
        $region22: #{tpu_custom_call.1} parent=11 // pred_check_branch
          %176 = sbr.rel (%p174) target = $region24
        $region23: #{tpu_custom_call.1} parent=11 // pred_region
          _
        $region24: #{tpu_custom_call.1} parent=11 // pred_fallthru
          _
        // Predicated region
        $region25: #{tpu_custom_call.1} parent=11 // pred_check
          %p177 = pneg %p127
        $region26: #{tpu_custom_call.1} parent=11 // pred_check_branch
          %179 = sbr.rel (%p177) target = $region28
        $region27: #{tpu_custom_call.1} parent=11 // pred_region
          _
        $region28: #{tpu_custom_call.1} parent=11 // pred_fallthru
          _
      $region12: #{tpu_custom_call.1} parent=5 // pred_fallthru
        _
      %p180 = scmp.lt.s32.totalorder %s17, 2
      // Predicated region
      $region29: #{tpu_custom_call.1} parent=5 // pred_check
        %p181 = pneg %p180
      $region30: #{tpu_custom_call.1} parent=5 // pred_check_branch
        %183 = sbr.rel (%p181) target = $region32
      $region31: #{tpu_custom_call.1} parent=5 // pred_region
        // Predicated region
        $region33: #{tpu_custom_call.1} parent=31 // pred_check
          %p184 = pneg %p37
        $region34: #{tpu_custom_call.1} parent=31 // pred_check_branch
          %186 = sbr.rel (%p184) target = $region36
        $region35: #{tpu_custom_call.1} parent=31 // pred_region
          %s187 = sand.u32 %s27, 1
          %s188 = scalar_lea.sflag [#allocation3], %s187
          %s189 = sand.u32 %s27, 1
          %s190 = smul.addr %s189, 64
          %s191 = scalar_lea.vmem [#allocation2], %s190
          %s193 = ssub.s32 1024, 1024
          %194 = vsyncadd %s188, %s193
          %s195 = smul.addr %s17, 8
          %s196 = smul.addr %s195, 128
          %s197 = scalar_lea.hbm %s0, %s196
          %s198 = sshll.u32 %s191, 4
          %s199 = int_to_ptr.vmem [resolvable:$true] %s198
          %204 = dma.hbm_to_vmem [thread:$0]  %s197, 1024, %s199, %s188, 256, 256, 16
        $region36: #{tpu_custom_call.1} parent=31 // pred_fallthru
          _
      $region32: #{tpu_custom_call.1} parent=5 // pred_fallthru
        _
      %p205 = scmp.le.s32.totalorder 1, %s17
      %p206 = scmp.lt.s32.totalorder %s17, 3
      %p207 = pnand %p205, %p206
      %p208 = pneg %p207
      // Predicated region
      $region37: #{tpu_custom_call.1} parent=5 // pred_check
        _
      $region38: #{tpu_custom_call.1} parent=5 // pred_check_branch
        %210 = sbr.rel (%p207) target = $region40
      $region39: #{tpu_custom_call.1} parent=5 // pred_region
        %s211 = ssub.s32 %s17, 1
        %s212 = sand.u32 %s30, 1
        %s213 = scalar_lea.sflag [#allocation3], %s212
        %s214 = sand.u32 %s30, 1
        %s215 = smul.addr %s214, 64
        %s216 = scalar_lea.vmem [#allocation2], %s215
        // Predicated region
        $region41: #{tpu_custom_call.1} parent=39 // pred_check
          %p217 = pneg %p43
        $region42: #{tpu_custom_call.1} parent=39 // pred_check_branch
          %219 = sbr.rel (%p217) target = $region44
        $region43: #{tpu_custom_call.1} parent=39 // pred_region
          %220 = dma.done %s213, 1024
        $region44: #{tpu_custom_call.1} parent=39 // pred_fallthru
          _
        %s221 = sand.u32 %s30, 1
        %s222 = scalar_lea.sflag [#allocation3], %s221
        %s223 = sand.u32 %s30, 1
        %s224 = smul.addr %s223, 64
        %s225 = scalar_lea.vmem [#allocation2], %s224
        %p226 = pneg %p43
        %p227 = pneg %p40
        %p228 = pneg %p64
        %p229 = pneg %p61
        %p230 = pneg %p85
        %p231 = pneg %p82
        %p232 = pneg %p106
        %p233 = pneg %p103
        %p234 = pneg %p127
        %p235 = pneg %p124
        %p236 = pneg %p153
        %p237 = pneg %p150
        %s238 = sand.u32 %s140, 1
        %s239 = scalar_lea.sflag [#allocation4], %s238
        %s240 = sand.u32 %s140, 1
        %s241 = smul.addr %s240, 64
        %s242 = scalar_lea.vmem [#allocation5], %s241
        %v243 = vld [vmem:[%s216] sm:$0xff]
        %v244 = vld [vmem:[%s216 + $0x8] sm:$0xff]
        %v245 = vld [vmem:[%s216 + $0x10] sm:$0xff]
        %v246 = vld [vmem:[%s216 + $0x18] sm:$0xff]
        %v247 = vld [vmem:[%s216 + $0x20] sm:$0xff]
        %v248 = vld [vmem:[%s216 + $0x28] sm:$0xff]
        %v249 = vld [vmem:[%s216 + $0x30] sm:$0xff]
        %v250 = vld [vmem:[%s216 + $0x38] sm:$0xff]
        %v251 = vadd.f32 %v243, %v244
        %252 = vadd.xlane.f32.xlu0 %v251
        %v253 = vpop.xlane.xlu0 %252
        %v254 = vadd.f32 %v245, %v246
        %255 = vadd.xlane.f32.xlu0 %v254
        %v256 = vpop.xlane.xlu0 %255
        %v257 = vadd.f32 %v247, %v248
        %258 = vadd.xlane.f32.xlu0 %v257
        %v259 = vpop.xlane.xlu0 %258
        %v260 = vadd.f32 %v249, %v250
        %261 = vadd.xlane.f32.xlu0 %v260
        %v262 = vpop.xlane.xlu0 %261
        %v263 = vld [vmem:[%s1] sm:$0xff]
        %v264 = vld [vmem:[%s1 + $0x8] sm:$0xff]
        %v265 = vld [vmem:[%s1 + $0x10] sm:$0xff]
        %v266 = vld [vmem:[%s1 + $0x18] sm:$0xff]
        %v267 = vmul.f32 %v263, %v253
        %v268 = vmul.f32 %v264, %v256
        %v269 = vmul.f32 %v265, %v259
        %v270 = vmul.f32 %v266, %v262
        %vm271 = vcmask 130048
        %v272 = vsel %vm271, %v267, 0.0
        %v273 = vsel %vm271, %v268, 0.0
        %v274 = vadd.f32 %v272, %v273
        %v275 = vsel %vm271, %v269, 0.0
        %v276 = vadd.f32 %v274, %v275
        %v277 = vsel %vm271, %v270, 0.0
        %v278 = vadd.f32 %v276, %v277
        %v279 = vrot.slane %v278, 4
        %v280 = vadd.f32 %v278, %v279
        %v281 = vrot.slane %v280, 2
        %v282 = vadd.f32 %v280, %v281
        %v283 = vrot.slane %v282, 1
        %v284 = vadd.f32 %v282, %v283
        %v285 = vld [vmem:[%s2] sm:$0x1]
        %v286 = vadd.f32 %v284, %v285
        %v287 = vmax.f32 %v286, 0.0
        %v288 = vld [vmem:[%s3] sm:$0xff]
        %v289 = vld [vmem:[%s3 + $0x8] sm:$0xff]
        %v290 = vld [vmem:[%s3 + $0x10] sm:$0xff]
        %v291 = vld [vmem:[%s3 + $0x18] sm:$0xff]
        %v292 = vlaneseq
        %v293 = vshrl.u32 %v292, 7
        %v294 = vsub.s32 0, %v293
        %v295 = vrot.slane %v287, %v294
        %v296 = vmul.f32 %v288, %v295
        %v297 = vmul.f32 %v289, %v295
        %v298 = vmul.f32 %v290, %v295
        %v299 = vmul.f32 %v291, %v295
        %v300 = vsel %vm271, %v296, 0.0
        %301 = vadd.xlane.f32.xlu0 %v300
        %v302 = vpop.xlane.xlu0 %301
        %v303 = vsel %vm271, %v297, 0.0
        %304 = vadd.xlane.f32.xlu0 %v303
        %v305 = vpop.xlane.xlu0 %304
        %v306 = vsel %vm271, %v298, 0.0
        %307 = vadd.xlane.f32.xlu0 %v306
        %v308 = vpop.xlane.xlu0 %307
        %v309 = vsel %vm271, %v299, 0.0
        %310 = vadd.xlane.f32.xlu0 %v309
        %v311 = vpop.xlane.xlu0 %310
        %v312 = vld [vmem:[%s4] sm:$0x1]
        %v314 = vlaneseq
        %v315 = vshrl.u32 %v314, 7
        %v316 = vsub.s32 0, %v315
        %v317 = vrot.slane %v312, %v316
        %319 = vbcast.lane.b32.xlu0 %v317, 256
        %v320 = vpop.permute.xlu0 %319
        %s322 = sor.u32 256, 8
        %323 = vbcast.lane.b32.xlu0 %v317, %s322
        %v324 = vpop.permute.xlu0 %323
        %s326 = sor.u32 256, 16
        %327 = vbcast.lane.b32.xlu0 %v317, %s326
        %v328 = vpop.permute.xlu0 %327
        %s330 = sor.u32 256, 24
        %331 = vbcast.lane.b32.xlu0 %v317, %s330
        %v332 = vpop.permute.xlu0 %331
        %v337 = vadd.f32 %v302, %v320
        %v338 = vadd.f32 %v305, %v324
        %v339 = vadd.f32 %v308, %v328
        %v340 = vadd.f32 %v311, %v332
        %v341 = vxor.u32 %v337, 2147483648
        %v342 = vxor.u32 %v338, 2147483648
        %v343 = vxor.u32 %v339, 2147483648
        %v344 = vxor.u32 %v340, 2147483648
        %v345 = vmul.f32 %v341, 1.442695
        %v346 = vpow.pop %v345
        %v347 = vmul.f32 %v342, 1.442695
        %v348 = vpow.pop %v347
        %v349 = vmul.f32 %v343, 1.442695
        %v350 = vpow.pop %v349
        %v351 = vmul.f32 %v344, 1.442695
        %v352 = vpow.pop %v351
        %v353 = vadd.f32 %v346, 1.0
        %v354 = vadd.f32 %v348, 1.0
        %v355 = vadd.f32 %v350, 1.0
        %v356 = vadd.f32 %v352, 1.0
        %v357 = vrcp.pop %v353
        %v358 = vmul.f32 1.0, %v357
        %v359 = vrcp.pop %v354
        %v360 = vmul.f32 1.0, %v359
        %v361 = vrcp.pop %v355
        %v362 = vmul.f32 1.0, %v361
        %v363 = vrcp.pop %v356
        %v364 = vmul.f32 1.0, %v363
        %366 = vset.pattern.permute.xlu0 0
        %367 = vperm.xlu0 %366, %v358
        %v368 = vpop.permute.xlu0 %367
        %371 = vset.pattern.permute.xlu0 0
        %372 = vperm.xlu0 %371, %v360
        %v373 = vpop.permute.xlu0 %372
        %376 = vset.pattern.permute.xlu0 0
        %377 = vperm.xlu0 %376, %v362
        %v378 = vpop.permute.xlu0 %377
        %381 = vset.pattern.permute.xlu0 0
        %382 = vperm.xlu0 %381, %v364
        %v383 = vpop.permute.xlu0 %382
        %v385 = vmul.f32 %v243, %v368
        %v386 = vmul.f32 %v244, %v368
        %v387 = vmul.f32 %v245, %v373
        %v388 = vmul.f32 %v246, %v373
        %v389 = vmul.f32 %v247, %v378
        %v390 = vmul.f32 %v248, %v378
        %v391 = vmul.f32 %v249, %v383
        %v392 = vmul.f32 %v250, %v383
        %393 = vst [vmem:[%s242] sm:$0xff] %v385
        %394 = vst [vmem:[%s242 + $0x8] sm:$0xff] %v386
        %395 = vst [vmem:[%s242 + $0x10] sm:$0xff] %v387
        %396 = vst [vmem:[%s242 + $0x18] sm:$0xff] %v388
        %397 = vst [vmem:[%s242 + $0x20] sm:$0xff] %v389
        %398 = vst [vmem:[%s242 + $0x28] sm:$0xff] %v390
        %399 = vst [vmem:[%s242 + $0x30] sm:$0xff] %v391
        %400 = vst [vmem:[%s242 + $0x38] sm:$0xff] %v392
        %s401 = sand.u32 %s140, 1
        %s402 = scalar_lea.sflag [#allocation4], %s401
        %s403 = sand.u32 %s140, 1
        %s404 = smul.addr %s403, 64
        %s405 = scalar_lea.vmem [#allocation5], %s404
        // Predicated region
        $region45: #{tpu_custom_call.1} parent=39 // pred_check
          %p406 = pneg %p150
        $region46: #{tpu_custom_call.1} parent=39 // pred_check_branch
          %408 = sbr.rel (%p406) target = $region48
        $region47: #{tpu_custom_call.1} parent=39 // pred_region
          %s410 = ssub.s32 1024, 1024
          %411 = vsyncadd %s402, %s410
          %s412 = smul.addr %s22, 8
          %s413 = smul.addr %s412, 128
          %s414 = scalar_lea.hbm %s5, %s413
          %s415 = sshll.u32 %s405, 4
          %s416 = int_to_ptr.vmem [resolvable:$true] %s415
          %421 = dma.vmem_to_hbm [thread:$0]  %s416, 1024, %s414, %s402, 256, 256, 16
        $region48: #{tpu_custom_call.1} parent=39 // pred_fallthru
          _
      $region40: #{tpu_custom_call.1} parent=5 // pred_fallthru
        _
      %p422 = scmp.le.s32.totalorder 2, %s17
      // Predicated region
      $region49: #{tpu_custom_call.1} parent=5 // pred_check
        %p423 = pneg %p422
      $region50: #{tpu_custom_call.1} parent=5 // pred_check_branch
        %425 = sbr.rel (%p423) target = $region52
      $region51: #{tpu_custom_call.1} parent=5 // pred_region
        %s426 = ssub.s32 %s17, 2
        // Predicated region
        $region53: #{tpu_custom_call.1} parent=51 // pred_check
          %p427 = pneg %p156
        $region54: #{tpu_custom_call.1} parent=51 // pred_check_branch
          %429 = sbr.rel (%p427) target = $region56
        $region55: #{tpu_custom_call.1} parent=51 // pred_region
          %s430 = sand.u32 %s141, 1
          %s431 = scalar_lea.sflag [#allocation4], %s430
          %s432 = sand.u32 %s141, 1
          %s433 = smul.addr %s432, 64
          %s434 = scalar_lea.vmem [#allocation5], %s433
          %435 = dma.done %s431, 1024
        $region56: #{tpu_custom_call.1} parent=51 // pred_fallthru
          _
      $region52: #{tpu_custom_call.1} parent=5 // pred_fallthru
        _
    $region6: #{tpu_custom_call.1} parent=1 // loop_footer
      %s21 = sadd.s32 1, %s17
    $region7: #{tpu_custom_call.1} parent=1 // loop_footer_branch
      %16 = sbr.rel target = $region3
    $region8: #{tpu_custom_call.1} parent=1 // loop_exit
      _
    %436 = vsyncpa [#allocation3], 1
    %s437 = scalar_lea.sflag [#allocation3], 1
    %438 = vsyncpa %s437, 1
    %439 = vsyncpa [#allocation4], 1
    %s440 = scalar_lea.sflag [#allocation4], 1
    %441 = vsyncpa %s440, 1

</llo_original>
